<compile_context>
chip_gen: v5e
topology: v5e:2x2
jax: 0.10.0
libtpu: 0.0.40
codegen_flags: <defaults>
</compile_context>

<pallas_src>
import jax
import jax.numpy as jnp
from jax.experimental import pallas as pl
from jax.experimental.pallas import tpu as pltpu


def _sse_kernel(x_ref, w_ref, b_ref, o_ref):
    # x_ref / o_ref: (C, T) tile.  w_ref: (1, C) in VMEM.  b_ref: (1,) in SMEM.
    x = x_ref[...]
    # Channel reduce as a (1,C)@(C,T) MXU matvec with f32 accumulation: avoids
    # materializing an f32 copy of the tile (halves vreg/VMEM pressure for
    # bf16 inputs) and keeps the VPU free for the final broadcast scale.
    g = jnp.dot(w_ref[...], x,
                preferred_element_type=jnp.float32,
                precision=jax.lax.Precision.HIGHEST) + b_ref[0]      # (1, T)
    z = jax.nn.sigmoid(g)                                            # (1, T), f32 (EUP)
    # Gate in the model dtype; only full-tile VPU op is the final multiply.
    o_ref[...] = x * z.astype(x.dtype)


def _pick_block_bytes():
    """Per-generation block budget: big tiles on 128 MiB-VMEM parts, smaller on v7x."""
    try:
        vmem_cap = int(pltpu.get_tpu_info().vmem_capacity_bytes)
    except Exception:
        vmem_cap = 64 * 1024 * 1024                  # conservative fallback
    if vmem_cap >= 96 * 1024 * 1024:                 # v5e / v6e: 128 MiB physical VMEM
        return 8 * 1024 * 1024
    return 3 * 1024 * 1024                           # v7x: 64 MiB per TensorCore


def sse_module_pallas(x_nchw, w1, b1, w2, b2,
                      bn_gamma, bn_beta, bn_mean, bn_var, bn_eps=1e-5,
                      max_block_bytes=None, donate_x=False):
    """sSE forward:  out = x * sigmoid(BN(conv2(conv1(x)))), eval-mode BN.

    x_nchw: (N, C, H, W).  Conv weights in PyTorch (out, in) 1x1 form:
    w1: (Cmid, C), b1: (Cmid,), w2: (1, Cmid), b2: (1,).
    """
    N, C, H, W = x_nchw.shape
    HW = H * W
    dtype = x_nchw.dtype
    itemsize = jnp.dtype(dtype).itemsize

    # ---- exact fold: conv1 -> conv2 -> BN(eval)  ==>  (1, C) weight + scalar bias
    scale = (bn_gamma / jnp.sqrt(bn_var + bn_eps)).astype(jnp.float32)    # (1,)
    shift = (bn_beta - bn_mean * scale).astype(jnp.float32)               # (1,)
    w2f = w2.astype(jnp.float32) * scale[:, None]                         # (1, Cmid)
    b2f = b2.astype(jnp.float32) * scale + shift                          # (1,)
    w_eff = (w2f @ w1.astype(jnp.float32)).reshape(1, C).astype(dtype)    # (1, C), MXU dtype
    b_eff = (w2f @ b1.astype(jnp.float32) + b2f).reshape(1)               # (1,) f32 -> SMEM

    # ---- tile sizing (no HBM pad/slice; partial last block is masked by Pallas) ----
    if max_block_bytes is None:
        max_block_bytes = _pick_block_bytes()
    sublane = max(8, 32 // itemsize)              # 8 (f32), 16 (bf16), 32 (int8/fp8)
    c_pad = -(-C // sublane) * sublane            # real VMEM rows after sublane padding
    lane = 128

    if HW <= lane:
        tile_hw = HW                              # full extent (allowed even if < 128)
        hw_tiles = 1
    else:
        n_lane_blocks = -(-HW // lane)
        per_lane_block = c_pad * lane * itemsize
        tile_blocks = max(1, min(n_lane_blocks, max_block_bytes // per_lane_block))
        # Keep >= 4 grid steps when possible so v7x's two TCs both get work
        # (costs only ~0.35us/extra step on single-TC chips).
        while N * (-(-n_lane_blocks // tile_blocks)) < 4 and tile_blocks > 1:
            tile_blocks = -(-tile_blocks // 2)
        tile_hw = tile_blocks * lane
        hw_tiles = -(-HW // tile_hw)

    grid = (N, hw_tiles)
    blk_bytes = c_pad * tile_hw * itemsize
    # 2x input + 2x output double-buffers + weight tile + compiler headroom.
    vmem_limit = max(4 * blk_bytes + (8 << 20), 16 << 20)

    x3d = x_nchw.reshape(N, C, HW)                # contiguous view, no transpose

    out3d = pl.pallas_call(
        _sse_kernel,
        out_shape=jax.ShapeDtypeStruct((N, C, HW), dtype),
        grid_spec=pltpu.PrefetchScalarGridSpec(
            num_scalar_prefetch=0,
            grid=grid,
            in_specs=[
                pl.BlockSpec((None, C, tile_hw), lambda n, j: (n, 0, j)),   # x slab
                pl.BlockSpec((1, C), lambda n, j: (0, 0)),                  # folded weight
                pl.BlockSpec(memory_space=pltpu.MemorySpace.SMEM),          # folded bias
            ],
            out_specs=pl.BlockSpec((None, C, tile_hw), lambda n, j: (n, 0, j)),
        ),
        compiler_params=pltpu.CompilerParams(
            dimension_semantics=("parallel", "parallel"),
            vmem_limit_bytes=int(vmem_limit),
        ),
        input_output_aliases=({0: 0} if donate_x else {}),
    )(x3d, w_eff, b_eff)

    return out3d.reshape(N, C, H, W)


def _reference(x_nchw, w1, b1, w2, b2, bn_gamma, bn_beta, bn_mean, bn_var, eps=1e-5):
    # pure-JAX reference of the same eval-mode forward (un-folded)
    x = jnp.transpose(x_nchw, (0, 2, 3, 1))                # NHWC
    s1 = jnp.einsum('nhwc,oc->nhwo', x, w1) + b1
    s2 = jnp.einsum('nhwc,oc->nhwo', s1, w2) + b2
    s2 = (s2 - bn_mean) / jnp.sqrt(bn_var + eps) * bn_gamma + bn_beta
    z = jax.nn.sigmoid(s2)
    return jnp.transpose(x * z, (0, 3, 1, 2))


if __name__ == "__main__":
    key = jax.random.PRNGKey(0)
    C = 32                      # channel = 32 -> channel // 16 = 2
    Cmid = C // 16

    k_x, k_w1, k_b1, k_w2, k_b2, k_x2 = jax.random.split(key, 6)

    # Conv2d weights as (out, in); 1x1 kernels squeezed.
    w1 = jax.random.normal(k_w1, (Cmid, C), dtype=jnp.float32) * 0.1
    b1 = jax.random.normal(k_b1, (Cmid,), dtype=jnp.float32) * 0.1
    w2 = jax.random.normal(k_w2, (1, Cmid), dtype=jnp.float32) * 0.1
    b2 = jax.random.normal(k_b2, (1,), dtype=jnp.float32) * 0.1

    # BatchNorm2d(1) default params / running stats (eval mode)
    bn_gamma = jnp.ones((1,), jnp.float32)
    bn_beta = jnp.zeros((1,), jnp.float32)
    bn_mean = jnp.zeros((1,), jnp.float32)
    bn_var = jnp.ones((1,), jnp.float32)

    # Tolerance covers MXU multi-pass f32 matvec + EUP sigmoid vs. XLA reference;
    # structural bugs (wrong fold / tiling / masking) would be orders larger.
    TOL = 1e-3

    # Main case: tile-aligned H*W.
    x = jax.random.normal(k_x, (2, C, 16, 16), dtype=jnp.float32)
    out = jax.block_until_ready(
        sse_module_pallas(x, w1, b1, w2, b2, bn_gamma, bn_beta, bn_mean, bn_var))
    ref = _reference(x, w1, b1, w2, b2, bn_gamma, bn_beta, bn_mean, bn_var)
    assert out.shape == x.shape
    assert jnp.allclose(out, ref, atol=TOL, rtol=TOL), "mismatch (aligned H*W)"

    # Boundary case: H*W = 169 -> partial last block exercises Pallas store masking.
    x2 = jax.random.normal(k_x2, (2, C, 13, 13), dtype=jnp.float32)
    out2 = jax.block_until_ready(
        sse_module_pallas(x2, w1, b1, w2, b2, bn_gamma, bn_beta, bn_mean, bn_var))
    ref2 = _reference(x2, w1, b1, w2, b2, bn_gamma, bn_beta, bn_mean, bn_var)
    assert out2.shape == x2.shape
    assert jnp.allclose(out2, ref2, atol=TOL, rtol=TOL), "mismatch (partial block)"

    print("KERNEL_OK")
</pallas_src>

<mosaic_0001>
module attributes {stable_mosaic.version = 11 : i64} {
  func.func @_sse_kernel(%arg0: i32, %arg1: i32, %arg2: memref<1x32x128xf32, #tpu.memory_space<vmem>>, %arg3: memref<1x32xf32, #tpu.memory_space<vmem>>, %arg4: memref<1xf32, #tpu.memory_space<smem>>, %arg5: memref<1x32x128xf32, #tpu.memory_space<vmem>>) attributes {dimension_semantics = [#tpu.dimension_semantics<parallel>, #tpu.dimension_semantics<parallel>], iteration_bounds = array<i64: 2, 2>, scalar_prefetch = 0 : i64, scratch_operands = 0 : i64, tpu.core_type = #tpu.core_type<tc>, window_params = [{transform_indices = @transform_0, window_bounds = array<i64: 1, 32, 128>}, {pipeline_mode = #tpu.pipeline_mode<synchronous>, transform_indices = @transform_1, window_bounds = array<i64: 1, 32>}, {transform_indices = @transform_2, window_bounds = array<i64: 1>}, {transform_indices = @transform_3, window_bounds = array<i64: 1, 32, 128>}]} {
    %c0 = arith.constant 0 : index
    %c0_0 = arith.constant 0 : index
    %c0_1 = arith.constant 0 : index
    %0 = vector.load %arg2[%c0, %c0_0, %c0_1] : memref<1x32x128xf32, #tpu.memory_space<vmem>>, vector<1x32x128xf32>
    %1 = vector.shape_cast %0 : vector<1x32x128xf32> to vector<32x128xf32>
    %c0_2 = arith.constant 0 : index
    %c0_3 = arith.constant 0 : index
    %2 = vector.load %arg3[%c0_2, %c0_3] : memref<1x32xf32, #tpu.memory_space<vmem>>, vector<1x32xf32>
    %cst = arith.constant dense<0.000000e+00> : vector<1x128xf32>
    %3 = tpu.matmul %2, %1, %cst {dimension_numbers = #tpu.dot_dimension_numbers<[1], [0], [0], [1], [0, 0, 1, 1], [], []>, precision = #tpu.contract_precision<fp32>} : vector<1x32xf32>, vector<32x128xf32>, vector<1x128xf32> -> vector<1x128xf32>
    %c0_4 = arith.constant 0 : index
    %4 = memref.load %arg4[%c0_4] : memref<1xf32, #tpu.memory_space<smem>>
    %5 = vector.broadcast %4 : f32 to vector<1x128xf32>
    %6 = arith.addf %3, %5 : vector<1x128xf32>
    %7 = arith.negf %6 : vector<1x128xf32>
    %8 = math.exp %7 : vector<1x128xf32>
    %cst_5 = arith.constant 1.000000e+00 : f32
    %9 = vector.broadcast %cst_5 : f32 to vector<1x128xf32>
    %10 = arith.addf %9, %8 : vector<1x128xf32>
    %11 = arith.divf %9, %10 : vector<1x128xf32>
    %12 = vector.broadcast %11 : vector<1x128xf32> to vector<32x128xf32>
    %13 = arith.mulf %1, %12 : vector<32x128xf32>
    %c0_6 = arith.constant 0 : index
    %c0_7 = arith.constant 0 : index
    %c0_8 = arith.constant 0 : index
    %14 = vector.load %arg5[%c0_6, %c0_7, %c0_8] : memref<1x32x128xf32, #tpu.memory_space<vmem>>, vector<1x32x128xf32>
    %15 = vector.shape_cast %14 : vector<1x32x128xf32> to vector<32x128xf32>
    %16 = vector.shape_cast %13 : vector<32x128xf32> to vector<1x32x128xf32>
    tpu.vector_store %arg5[%c0_6, %c0_7, %c0_8], %16 {strides = array<i32>} : memref<1x32x128xf32, #tpu.memory_space<vmem>>, vector<1x32x128xf32>,
    return
  }
  func.func @transform_0(%arg0: i32, %arg1: i32) -> (i32, i32, i32) {
    %c0_i32 = arith.constant 0 : i32
    %c0_i32_0 = arith.constant 0 : i32
    return %arg0, %c0_i32, %arg1 : i32, i32, i32
  }
  func.func @transform_1(%arg0: i32, %arg1: i32) -> (i32, i32) {
    %c0_i32 = arith.constant 0 : i32
    %c0_i32_0 = arith.constant 0 : i32
    %c0_i32_1 = arith.constant 0 : i32
    return %c0_i32, %c0_i32_0 : i32, i32
  }
  func.func @transform_2(%arg0: i32, %arg1: i32) -> i32 {
    %c0_i32 = arith.constant 0 : i32
    %c0_i32_0 = arith.constant 0 : i32
    return %c0_i32 : i32
  }
  func.func @transform_3(%arg0: i32, %arg1: i32) -> (i32, i32, i32) {
    %c0_i32 = arith.constant 0 : i32
    %c0_i32_0 = arith.constant 0 : i32
    return %arg0, %c0_i32, %arg1 : i32, i32, i32
  }
}

</mosaic_0001>

<llo_original>
// kernel: tpu_custom_call.1
$region0: #{tpu_custom_call.1}
  #allocation0 [shape = 'u32[]', space=smem, size = 0x4, offset = 0x4, fixed_abs, tag = 'smem constant byte address 0x4 - core index']
  #allocation1 [shape = 'u32[72,128]{1,0:T(1,128)}', space=vmem, size = 0x9000, scoped, tag = 'internal scratch']
  #allocation2 [shape = 'f32[1]{0:T(128)S(6)}', space=smem, size = 0x200, scoped, tag = 'scoped memory for tpu_custom_call.1']
  %s0 = inlined_call_operand.hbm [shape: f32[2,32,256], index: 0, kind: input, shape index: {}]
  %s1 = inlined_call_operand.vmem [shape: f32[1,32], index: 1, kind: input, shape index: {}]
  %s2 = inlined_call_operand.<no memory space> [shape: f32[1], index: 2, kind: input, shape index: {}]
  %s3 = inlined_call_operand.hbm [shape: f32[2,32,256], index: 3, kind: output, shape index: {}]
  %s4 = sld [smem:[#allocation0]]
  $region49: #{tpu_custom_call.1} parent=0
    _
  %s6 = ssub.s32 1, %s4
  %s7 = scalar_select 0, %s6, %s4
  %8 = sst [smem:[#allocation2]] %s2
  $region1: #{tpu_custom_call.1} parent=0
    #allocation3 [shape = 'u8[32768]{0}', space=vmem, size = 0x8000, scoped, tag = 'input window, operand 0']
    #allocation4 [shape = 's32[2]{0}', space=sflag, size = 0x8, scoped, tag = 'scoped memory for tpu_custom_call.1']
    #allocation5 [shape = 's32[2]{0}', space=sflag, size = 0x8, scoped, tag = 'scoped memory for tpu_custom_call.1']
    #allocation6 [shape = 'u8[32768]{0}', space=vmem, size = 0x8000, scoped, tag = 'output window, operand 0']
    %9 = vsyncpa [#allocation4], 0
    %s10 = scalar_lea.sflag [#allocation4], 1
    %11 = vsyncpa %s10, 0
    %12 = vsyncpa [#allocation5], 0
    %s13 = scalar_lea.sflag [#allocation5], 1
    %14 = vsyncpa %s13, 0
    loop: start=0, step=1, limit=6
    $region2: #{tpu_custom_call.1} parent=1 // loop_pre_header
      _
    $region3: #{tpu_custom_call.1} parent=1 // loop_header
      %s16 = sphi 0, %s20
      %p17 = scmp.ge.s32.totalorder %s16, 6
      %s23 = sphi 0, %s35
      %s24 = sphi 0, %s31
      %s25 = sphi 0, %s23
      %s26 = sphi 0, %s24
      %s27 = sphi 0, %s25
      %s28 = sphi 0, %s26
      %s40 = sphi 0, %s42
      %s43 = sphi 0, %s40
      %s44 = sphi 0, %s43
      %s60 = sphi 0, %s44
      %s64 = sphi 0, %s64
      %s66 = sphi 0, %s64
      %s67 = sphi 0, %s66
      %s81 = sphi 0, %s67
      %s85 = sphi 0, %s85
      %s87 = sphi 0, %s85
      %s88 = sphi 0, %s87
      %s102 = sphi 0, %s88
      %s110 = sphi 0, %s112
      %s113 = sphi 0, %s110
      %s114 = sphi 0, %s113
      %s130 = sphi 0, %s114
    $region4: #{tpu_custom_call.1} parent=1 // loop_header_branch
      %19 = sbr.rel (%p17) target = $region8
    $region5: #{tpu_custom_call.1} parent=1 // loop_body
      %s21 = ssub.s32 %s16, 1
      %s22 = ssub.s32 %s16, 2
      %s29 = sadd.s32 1, %s24
      %p30 = scmp.ge.s32.totalorder %s29, 2
      %s31 = scalar_select %p30, 0, %s29
      %s32 = sadd.s32 1, %s23
      %s33 = scalar_select %p30, %s32, %s23
      %p34 = scmp.ge.s32.totalorder %s33, 2
      %s35 = scalar_select %p34, 0, %s33
      %s36 = ssub.s32 %s23, %s35
      %s37 = ssub.s32 %s24, %s31
      %s38 = sor.u32 %s36, %s37
      %p39 = scmp.eq.s32.totalorder %s38, 0
      %s41 = sadd.s32 %s40, 1
      %s42 = scalar_select %p39, %s40, %s41
      %p45 = pneg %p39
      %p46 = scmp.eq.s32.totalorder %s16, 3
      %p47 = por %p45, %p46
      %p48 = scmp.ne.s32.totalorder %s40, %s43
      %p49 = scmp.eq.s32.totalorder %s16, 0
      %p50 = por %p48, %p49
      %p51 = scmp.ne.s32.totalorder %s40, %s43
      %p52 = scmp.eq.s32.totalorder %s21, 3
      %p53 = por %p51, %p52
      %p54 = scmp.ne.s32.totalorder %s43, %s44
      %p55 = scmp.eq.s32.totalorder %s21, 0
      %p56 = por %p54, %p55
      %p57 = scmp.ne.s32.totalorder %s43, %s44
      %p58 = scmp.eq.s32.totalorder %s22, 3
      %p59 = por %p57, %p58
      %p61 = scmp.ne.s32.totalorder %s44, %s60
      %p62 = scmp.eq.s32.totalorder %s22, 0
      %p63 = por %p61, %p62
      %s65 = sadd.s32 %s64, 1
      %p68 = scmp.eq.s32.totalorder %s16, 3
      %p69 = scmp.ne.s32.totalorder %s64, %s66
      %p70 = scmp.eq.s32.totalorder %s16, 0
      %p71 = por %p69, %p70
      %p72 = scmp.ne.s32.totalorder %s64, %s66
      %p73 = scmp.eq.s32.totalorder %s21, 3
      %p74 = por %p72, %p73
      %p75 = scmp.ne.s32.totalorder %s66, %s67
      %p76 = scmp.eq.s32.totalorder %s21, 0
      %p77 = por %p75, %p76
      %p78 = scmp.ne.s32.totalorder %s66, %s67
      %p79 = scmp.eq.s32.totalorder %s22, 3
      %p80 = por %p78, %p79
      %p82 = scmp.ne.s32.totalorder %s67, %s81
      %p83 = scmp.eq.s32.totalorder %s22, 0
      %p84 = por %p82, %p83
      %s86 = sadd.s32 %s85, 1
      %p89 = scmp.eq.s32.totalorder %s16, 3
      %p90 = scmp.ne.s32.totalorder %s85, %s87
      %p91 = scmp.eq.s32.totalorder %s16, 0
      %p92 = por %p90, %p91
      %p93 = scmp.ne.s32.totalorder %s85, %s87
      %p94 = scmp.eq.s32.totalorder %s21, 3
      %p95 = por %p93, %p94
      %p96 = scmp.ne.s32.totalorder %s87, %s88
      %p97 = scmp.eq.s32.totalorder %s21, 0
      %p98 = por %p96, %p97
      %p99 = scmp.ne.s32.totalorder %s87, %s88
      %p100 = scmp.eq.s32.totalorder %s22, 3
      %p101 = por %p99, %p100
      %p103 = scmp.ne.s32.totalorder %s88, %s102
      %p104 = scmp.eq.s32.totalorder %s22, 0
      %p105 = por %p103, %p104
      %s106 = ssub.s32 %s23, %s35
      %s107 = ssub.s32 %s24, %s31
      %s108 = sor.u32 %s106, %s107
      %p109 = scmp.eq.s32.totalorder %s108, 0
      %s111 = sadd.s32 %s110, 1
      %s112 = scalar_select %p109, %s110, %s111
      %p115 = pneg %p109
      %p116 = scmp.eq.s32.totalorder %s16, 3
      %p117 = por %p115, %p116
      %p118 = scmp.ne.s32.totalorder %s110, %s113
      %p119 = scmp.eq.s32.totalorder %s16, 0
      %p120 = por %p118, %p119
      %p121 = scmp.ne.s32.totalorder %s110, %s113
      %p122 = scmp.eq.s32.totalorder %s21, 3
      %p123 = por %p121, %p122
      %p124 = scmp.ne.s32.totalorder %s113, %s114
      %p125 = scmp.eq.s32.totalorder %s21, 0
      %p126 = por %p124, %p125
      %p127 = scmp.ne.s32.totalorder %s113, %s114
      %p128 = scmp.eq.s32.totalorder %s22, 3
      %p129 = por %p127, %p128
      %p131 = scmp.ne.s32.totalorder %s114, %s130
      %p132 = scmp.eq.s32.totalorder %s22, 0
      %p133 = por %p131, %p132
      %p134 = scmp.le.s32.totalorder 1, %s16
      %p135 = scmp.lt.s32.totalorder %s16, 5
      %p136 = pnand %p134, %p135
      %p137 = pneg %p136
      // Predicated region
      $region9: #{tpu_custom_call.1} parent=5 // pred_check
        _
      $region10: #{tpu_custom_call.1} parent=5 // pred_check_branch
        %139 = sbr.rel (%p136) target = $region12
      $region11: #{tpu_custom_call.1} parent=5 // pred_region
        %s140 = ssub.s32 %s16, 1
        // Predicated region
        $region13: #{tpu_custom_call.1} parent=11 // pred_check
          %p141 = pneg %p77
        $region14: #{tpu_custom_call.1} parent=11 // pred_check_branch
          %143 = sbr.rel (%p141) target = $region16
        $region15: #{tpu_custom_call.1} parent=11 // pred_region
          _
        $region16: #{tpu_custom_call.1} parent=11 // pred_fallthru
          _
        // Predicated region
        $region17: #{tpu_custom_call.1} parent=11 // pred_check
          %p144 = pneg %p98
        $region18: #{tpu_custom_call.1} parent=11 // pred_check_branch
          %146 = sbr.rel (%p144) target = $region20
        $region19: #{tpu_custom_call.1} parent=11 // pred_region
          _
        $region20: #{tpu_custom_call.1} parent=11 // pred_fallthru
          _
      $region12: #{tpu_custom_call.1} parent=5 // pred_fallthru
        _
      %p147 = scmp.lt.s32.totalorder %s16, 4
      // Predicated region
      $region21: #{tpu_custom_call.1} parent=5 // pred_check
        %p148 = pneg %p147
      $region22: #{tpu_custom_call.1} parent=5 // pred_check_branch
        %150 = sbr.rel (%p148) target = $region24
      $region23: #{tpu_custom_call.1} parent=5 // pred_region
        // Predicated region
        $region25: #{tpu_custom_call.1} parent=23 // pred_check
          %p151 = pneg %p50
        $region26: #{tpu_custom_call.1} parent=23 // pred_check_branch
          %153 = sbr.rel (%p151) target = $region28
        $region27: #{tpu_custom_call.1} parent=23 // pred_region
          %s154 = sand.u32 %s40, 1
          %s155 = scalar_lea.sflag [#allocation4], %s154
          %s156 = sand.u32 %s40, 1
          %s157 = smul.addr %s156, 32
          %s158 = scalar_lea.vmem [#allocation3], %s157
          %160 = vsyncadd %s155, 0
          %s161 = smul.addr %s23, 8
          %s162 = sadd.s32 %s24, %s161
          %s163 = smul.addr %s162, 8
          %s164 = scalar_lea.hbm %s0, %s163
          %s165 = sshll.u32 %s164, 4
          %s166 = int_to_ptr.hbm [resolvable:$true] %s165
          %s167 = sshll.u32 %s158, 4
          %s168 = int_to_ptr.vmem [resolvable:$true] %s167
          %173 = dma.hbm_to_vmem [thread:$0]  %s166, 512, %s168, %s155, 256, 128, 8
        $region28: #{tpu_custom_call.1} parent=23 // pred_fallthru
          _
      $region24: #{tpu_custom_call.1} parent=5 // pred_fallthru
        _
      %p174 = scmp.le.s32.totalorder 1, %s16
      %p175 = scmp.lt.s32.totalorder %s16, 5
      %p176 = pnand %p174, %p175
      %p177 = pneg %p176
      // Predicated region
      $region29: #{tpu_custom_call.1} parent=5 // pred_check
        _
      $region30: #{tpu_custom_call.1} parent=5 // pred_check_branch
        %179 = sbr.rel (%p176) target = $region32
      $region31: #{tpu_custom_call.1} parent=5 // pred_region
        %s180 = ssub.s32 %s16, 1
        %s181 = sand.u32 %s43, 1
        %s182 = scalar_lea.sflag [#allocation4], %s181
        %s183 = sand.u32 %s43, 1
        %s184 = smul.addr %s183, 32
        %s185 = scalar_lea.vmem [#allocation3], %s184
        // Predicated region
        $region33: #{tpu_custom_call.1} parent=31 // pred_check
          %p186 = pneg %p56
        $region34: #{tpu_custom_call.1} parent=31 // pred_check_branch
          %188 = sbr.rel (%p186) target = $region36
        $region35: #{tpu_custom_call.1} parent=31 // pred_region
          %190 = dma.done %s182, 512
        $region36: #{tpu_custom_call.1} parent=31 // pred_fallthru
          _
        %s191 = sand.u32 %s43, 1
        %s192 = scalar_lea.sflag [#allocation4], %s191
        %s193 = sand.u32 %s43, 1
        %s194 = smul.addr %s193, 32
        %s195 = scalar_lea.vmem [#allocation3], %s194
        %p196 = pneg %p56
        %p197 = pneg %p53
        %p198 = pneg %p77
        %p199 = pneg %p74
        %p200 = pneg %p98
        %p201 = pneg %p95
        %p202 = pneg %p126
        %p203 = pneg %p123
        %s204 = sand.u32 %s113, 1
        %s205 = scalar_lea.sflag [#allocation5], %s204
        %s206 = sand.u32 %s113, 1
        %s207 = smul.addr %s206, 32
        %s208 = scalar_lea.vmem [#allocation6], %s207
        %v209 = vld [vmem:[%s185] sm:$0xff]
        %v210 = vld [vmem:[%s185 + $0x8] sm:$0xff]
        %v211 = vld [vmem:[%s185 + $0x10] sm:$0xff]
        %v212 = vld [vmem:[%s185 + $0x18] sm:$0xff]
        %v213 = vld [vmem:[%s1] sm:$0x1]
        %s214 = sld [smem:[#allocation2]]
        %v215 = vstv %s214
        %vm216 = vcmask 261120
        %v218 = vsel %vm216, %v213, 0
        %220 = vmatpush.msra.mxu0 0.0
        %221 = vmatpush.msra.mxu0 0.0
        %222 = vmatpush.msra.mxu0 0.0
        %223 = vmatpush.msra.mxu0 0.0
        %224 = vmatpush.msra.mxu0 0.0
        %225 = vmatpush.msra.mxu0 0.0
        %226 = vmatpush.msra.mxu0 0.0
        %227 = vmatpush.msra.mxu0 0.0
        %228 = vmatpush.msra.mxu0 0.0
        %229 = vmatpush.msra.mxu0 0.0
        %230 = vmatpush.msra.mxu0 0.0
        %231 = vmatpush.msra.mxu0 0.0
        %v232 = vand.u32 %v212, 4294901760
        %233 = vmatpush.msra.mxu0 %v232
        %v234 = vand.u32 %v211, 4294901760
        %235 = vmatpush.msra.mxu0 %v234
        %v236 = vand.u32 %v210, 4294901760
        %237 = vmatpush.msra.mxu0 %v236
        %v238 = vand.u32 %v209, 4294901760
        %239 = vmatpush.msra.mxu0 %v238
        %v240 = vand.u32 %v218, 4294901760
        %v241 = vsub.f32 %v218, %v240
        %v242 = vand.u32 %v241, 4294901760
        %v243 = vsub.f32 %v241, %v242
        %v244 = vand.u32 %v243, 4294901760
        %245 = vmatmul.f32.gmra.mxu0 %v244
        %v246 = vpop.f32.mrf.mxu0
        %v247 = vadd.f32 %v215, %v246
        %248 = vdwg.mxu0
        %249 = vmatpush.msra.mxu0 0.0
        %250 = vmatpush.msra.mxu0 0.0
        %251 = vmatpush.msra.mxu0 0.0
        %252 = vmatpush.msra.mxu0 0.0
        %253 = vmatpush.msra.mxu0 0.0
        %254 = vmatpush.msra.mxu0 0.0
        %255 = vmatpush.msra.mxu0 0.0
        %256 = vmatpush.msra.mxu0 0.0
        %257 = vmatpush.msra.mxu0 0.0
        %258 = vmatpush.msra.mxu0 0.0
        %259 = vmatpush.msra.mxu0 0.0
        %260 = vmatpush.msra.mxu0 0.0
        %v261 = vand.u32 %v212, 4294901760
        %v262 = vsub.f32 %v212, %v261
        %v263 = vand.u32 %v262, 4294901760
        %v264 = vsub.f32 %v262, %v263
        %v265 = vand.u32 %v264, 4294901760
        %266 = vmatpush.msra.mxu0 %v265
        %v267 = vand.u32 %v211, 4294901760
        %v268 = vsub.f32 %v211, %v267
        %v269 = vand.u32 %v268, 4294901760
        %v270 = vsub.f32 %v268, %v269
        %v271 = vand.u32 %v270, 4294901760
        %272 = vmatpush.msra.mxu0 %v271
        %v273 = vand.u32 %v210, 4294901760
        %v274 = vsub.f32 %v210, %v273
        %v275 = vand.u32 %v274, 4294901760
        %v276 = vsub.f32 %v274, %v275
        %v277 = vand.u32 %v276, 4294901760
        %278 = vmatpush.msra.mxu0 %v277
        %v279 = vand.u32 %v209, 4294901760
        %v280 = vsub.f32 %v209, %v279
        %v281 = vand.u32 %v280, 4294901760
        %v282 = vsub.f32 %v280, %v281
        %v283 = vand.u32 %v282, 4294901760
        %284 = vmatpush.msra.mxu0 %v283
        %v285 = vand.u32 %v218, 4294901760
        %286 = vmatmul.f32.gmra.mxu0 %v285
        %v287 = vpop.f32.mrf.mxu0
        %v288 = vadd.f32 %v247, %v287
        %289 = vdwg.mxu0
        %290 = vmatpush.msra.mxu0 0.0
        %291 = vmatpush.msra.mxu0 0.0
        %292 = vmatpush.msra.mxu0 0.0
        %293 = vmatpush.msra.mxu0 0.0
        %294 = vmatpush.msra.mxu0 0.0
        %295 = vmatpush.msra.mxu0 0.0
        %296 = vmatpush.msra.mxu0 0.0
        %297 = vmatpush.msra.mxu0 0.0
        %298 = vmatpush.msra.mxu0 0.0
        %299 = vmatpush.msra.mxu0 0.0
        %300 = vmatpush.msra.mxu0 0.0
        %301 = vmatpush.msra.mxu0 0.0
        %v302 = vand.u32 %v212, 4294901760
        %v303 = vsub.f32 %v212, %v302
        %304 = vmatpush.msra.mxu0 %v303
        %v305 = vand.u32 %v211, 4294901760
        %v306 = vsub.f32 %v211, %v305
        %307 = vmatpush.msra.mxu0 %v306
        %v308 = vand.u32 %v210, 4294901760
        %v309 = vsub.f32 %v210, %v308
        %310 = vmatpush.msra.mxu0 %v309
        %v311 = vand.u32 %v209, 4294901760
        %v312 = vsub.f32 %v209, %v311
        %313 = vmatpush.msra.mxu0 %v312
        %v314 = vand.u32 %v218, 4294901760
        %v315 = vsub.f32 %v218, %v314
        %316 = vmatmul.f32.gmra.mxu0 %v315
        %v317 = vpop.f32.mrf.mxu0
        %v318 = vadd.f32 %v288, %v317
        %319 = vdwg.mxu0
        %320 = vmatpush.msra.mxu0 0.0
        %321 = vmatpush.msra.mxu0 0.0
        %322 = vmatpush.msra.mxu0 0.0
        %323 = vmatpush.msra.mxu0 0.0
        %324 = vmatpush.msra.mxu0 0.0
        %325 = vmatpush.msra.mxu0 0.0
        %326 = vmatpush.msra.mxu0 0.0
        %327 = vmatpush.msra.mxu0 0.0
        %328 = vmatpush.msra.mxu0 0.0
        %329 = vmatpush.msra.mxu0 0.0
        %330 = vmatpush.msra.mxu0 0.0
        %331 = vmatpush.msra.mxu0 0.0
        %v332 = vand.u32 %v212, 4294901760
        %333 = vmatpush.msra.mxu0 %v332
        %v334 = vand.u32 %v211, 4294901760
        %335 = vmatpush.msra.mxu0 %v334
        %v336 = vand.u32 %v210, 4294901760
        %337 = vmatpush.msra.mxu0 %v336
        %v338 = vand.u32 %v209, 4294901760
        %339 = vmatpush.msra.mxu0 %v338
        %v340 = vand.u32 %v218, 4294901760
        %v341 = vsub.f32 %v218, %v340
        %v342 = vand.u32 %v341, 4294901760
        %343 = vmatmul.f32.gmra.mxu0 %v342
        %v344 = vpop.f32.mrf.mxu0
        %v345 = vadd.f32 %v318, %v344
        %346 = vdwg.mxu0
        %347 = vmatpush.msra.mxu0 0.0
        %348 = vmatpush.msra.mxu0 0.0
        %349 = vmatpush.msra.mxu0 0.0
        %350 = vmatpush.msra.mxu0 0.0
        %351 = vmatpush.msra.mxu0 0.0
        %352 = vmatpush.msra.mxu0 0.0
        %353 = vmatpush.msra.mxu0 0.0
        %354 = vmatpush.msra.mxu0 0.0
        %355 = vmatpush.msra.mxu0 0.0
        %356 = vmatpush.msra.mxu0 0.0
        %357 = vmatpush.msra.mxu0 0.0
        %358 = vmatpush.msra.mxu0 0.0
        %v359 = vand.u32 %v212, 4294901760
        %v360 = vsub.f32 %v212, %v359
        %v361 = vand.u32 %v360, 4294901760
        %362 = vmatpush.msra.mxu0 %v361
        %v363 = vand.u32 %v211, 4294901760
        %v364 = vsub.f32 %v211, %v363
        %v365 = vand.u32 %v364, 4294901760
        %366 = vmatpush.msra.mxu0 %v365
        %v367 = vand.u32 %v210, 4294901760
        %v368 = vsub.f32 %v210, %v367
        %v369 = vand.u32 %v368, 4294901760
        %370 = vmatpush.msra.mxu0 %v369
        %v371 = vand.u32 %v209, 4294901760
        %v372 = vsub.f32 %v209, %v371
        %v373 = vand.u32 %v372, 4294901760
        %374 = vmatpush.msra.mxu0 %v373
        %v375 = vand.u32 %v218, 4294901760
        %376 = vmatmul.f32.gmra.mxu0 %v375
        %v377 = vpop.f32.mrf.mxu0
        %v378 = vadd.f32 %v345, %v377
        %379 = vdwg.mxu0
        %380 = vmatpush.msra.mxu0 0.0
        %381 = vmatpush.msra.mxu0 0.0
        %382 = vmatpush.msra.mxu0 0.0
        %383 = vmatpush.msra.mxu0 0.0
        %384 = vmatpush.msra.mxu0 0.0
        %385 = vmatpush.msra.mxu0 0.0
        %386 = vmatpush.msra.mxu0 0.0
        %387 = vmatpush.msra.mxu0 0.0
        %388 = vmatpush.msra.mxu0 0.0
        %389 = vmatpush.msra.mxu0 0.0
        %390 = vmatpush.msra.mxu0 0.0
        %391 = vmatpush.msra.mxu0 0.0
        %v392 = vand.u32 %v212, 4294901760
        %393 = vmatpush.msra.mxu0 %v392
        %v394 = vand.u32 %v211, 4294901760
        %395 = vmatpush.msra.mxu0 %v394
        %v396 = vand.u32 %v210, 4294901760
        %397 = vmatpush.msra.mxu0 %v396
        %v398 = vand.u32 %v209, 4294901760
        %399 = vmatpush.msra.mxu0 %v398
        %v400 = vand.u32 %v218, 4294901760
        %401 = vmatmul.f32.gmra.mxu0 %v400
        %v402 = vpop.f32.mrf.mxu0
        %v403 = vadd.f32 %v378, %v402
        %404 = vdwg.mxu0
        %v405 = vxor.u32 %v403, 2147483648
        %v406 = vmul.f32 %v405, 1.442695
        %v407 = vpow.pop %v406
        %v408 = vadd.f32 %v407, 1.0
        %v409 = vrcp.pop %v408
        %v410 = vmul.f32 %v408, %v409
        %v411 = vsub.f32 1.0, %v410
        %v412 = vmul.f32 %v409, %v411
        %v413 = vadd.f32 %v409, %v412
        %vm414 = vweird.f32 %v408
        %vm415 = vweird.f32 %v409
        %vm416 = vmor %vm414, %vm415
        %v417 = vsel %vm416, %v409, %v413
        %v418 = vand.u32 2147483647, %v408
        %vm419 = vcmp.eq.f32.partialorder %v418, 8.507059e+37
        %v420 = vand.u32 %v408, 2147483648
        %v421 = vor.u32 1.1754944e-38, %v420
        %v422 = vsel %vm419, %v421, %v417
        %v423 = vmul.f32 1.0, %v422
        %v424 = vperm.slane %v423, 0
        %v425 = vmul.f32 %v209, %v424
        %v426 = vmul.f32 %v210, %v424
        %v427 = vmul.f32 %v211, %v424
        %v428 = vmul.f32 %v212, %v424
        %429 = vst [vmem:[%s208] sm:$0xff] %v425
        %430 = vst [vmem:[%s208 + $0x8] sm:$0xff] %v426
        %431 = vst [vmem:[%s208 + $0x10] sm:$0xff] %v427
        %432 = vst [vmem:[%s208 + $0x18] sm:$0xff] %v428
        %s433 = sand.u32 %s113, 1
        %s434 = scalar_lea.sflag [#allocation5], %s433
        %s435 = sand.u32 %s113, 1
        %s436 = smul.addr %s435, 32
        %s437 = scalar_lea.vmem [#allocation6], %s436
        // Predicated region
        $region37: #{tpu_custom_call.1} parent=31 // pred_check
          %p438 = pneg %p123
        $region38: #{tpu_custom_call.1} parent=31 // pred_check_branch
          %440 = sbr.rel (%p438) target = $region40
        $region39: #{tpu_custom_call.1} parent=31 // pred_region
          %442 = vsyncadd %s434, 0
          %s443 = smul.addr %s25, 8
          %s444 = sadd.s32 %s26, %s443
          %s445 = smul.addr %s444, 8
          %s446 = scalar_lea.hbm %s3, %s445
          %s447 = sshll.u32 %s437, 4
          %s448 = int_to_ptr.vmem [resolvable:$true] %s447
          %s449 = sshll.u32 %s446, 4
          %s450 = int_to_ptr.hbm [resolvable:$true] %s449
          %455 = dma.vmem_to_hbm [thread:$0]  %s448, 512, %s450, %s434, 128, 256, 8
        $region40: #{tpu_custom_call.1} parent=31 // pred_fallthru
          _
      $region32: #{tpu_custom_call.1} parent=5 // pred_fallthru
        _
      %p456 = scmp.le.s32.totalorder 2, %s16
      // Predicated region
      $region41: #{tpu_custom_call.1} parent=5 // pred_check
        %p457 = pneg %p456
      $region42: #{tpu_custom_call.1} parent=5 // pred_check_branch
        %459 = sbr.rel (%p457) target = $region44
      $region43: #{tpu_custom_call.1} parent=5 // pred_region
        %s460 = ssub.s32 %s16, 2
        // Predicated region
        $region45: #{tpu_custom_call.1} parent=43 // pred_check
          %p461 = pneg %p129
        $region46: #{tpu_custom_call.1} parent=43 // pred_check_branch
          %463 = sbr.rel (%p461) target = $region48
        $region47: #{tpu_custom_call.1} parent=43 // pred_region
          %s464 = sand.u32 %s114, 1
          %s465 = scalar_lea.sflag [#allocation5], %s464
          %s466 = sand.u32 %s114, 1
          %s467 = smul.addr %s466, 32
          %s468 = scalar_lea.vmem [#allocation6], %s467
          %470 = dma.done %s465, 512
        $region48: #{tpu_custom_call.1} parent=43 // pred_fallthru
          _
      $region44: #{tpu_custom_call.1} parent=5 // pred_fallthru
        _
    $region6: #{tpu_custom_call.1} parent=1 // loop_footer
      %s20 = sadd.s32 1, %s16
    $region7: #{tpu_custom_call.1} parent=1 // loop_footer_branch
      %15 = sbr.rel target = $region3
    $region8: #{tpu_custom_call.1} parent=1 // loop_exit
      _
    %471 = vsyncpa [#allocation4], 1
    %s472 = scalar_lea.sflag [#allocation4], 1
    %473 = vsyncpa %s472, 1
    %474 = vsyncpa [#allocation5], 1
    %s475 = scalar_lea.sflag [#allocation5], 1
    %476 = vsyncpa %s475, 1

</llo_original>
